<compile_context>
chip_gen: v5e
topology: v5e:2x2
jax: 0.10.0
libtpu: 0.0.40
codegen_flags: <defaults>
</compile_context>

<pallas_src>
import functools

import jax
import jax.numpy as jnp
from jax.experimental import pallas as pl
from jax.experimental.pallas import tpu as pltpu


def _round_up(x, m):
    return ((x + m - 1) // m) * m


def _vmem_capacity_bytes():
    """Physical VMEM of the local chip; conservative (v7x, 64 MiB) fallback."""
    try:
        return int(pltpu.get_tpu_info().vmem_capacity_bytes)
    except Exception:
        return 64 * 1024 * 1024


def _default_num_slices():
    """2 partial-sum slices on chips with 2 TensorCores / megacore (v4, v5p,
    v7x), 1 on single-TC chips (v2/v3 per-device, v5e, v6e)."""
    try:
        kind = jax.devices()[0].device_kind.lower()
    except Exception:
        return 1
    single_tc_tags = ("v2", "v3", "v5 lite", "v5e", "v5litepod", "v6 lite", "v6e")
    if any(tag in kind for tag in single_tc_tags):
        return 1
    return 2


def _pick_tile_n(n, c, in_itemsize, vmem_cap):
    """Columns (= batch rows) per tile.  Lane axis => multiple of 128.
    VMEM accounting uses lane/sublane-padded sizes (the real footprint)."""
    c_pad = _round_up(c, 8)
    per_col = (
        c_pad * in_itemsize * 2 * 2    # 2 inputs x 2 pipeline buffers (sublane padded)
        + c_pad * 4 * 8                # ~8 f32 in-kernel temporaries (upcasts/exp/diff/...)
        + 8 * 4                        # (1, tile_n) f32 accumulator, padded to 8 sublanes
    )
    budget = int(vmem_cap * 0.45)      # leave headroom for compiler scratch / epilogue
    cols = budget // max(1, per_col)
    # Generation-aware cap: 128 MiB chips (v5e/v6e) take big tiles to amortize
    # the ~0.35us/step overhead; v7x (64 MiB VMEM) stays bounded.
    cap = 32768 if vmem_cap >= (96 << 20) else 16384
    cols = max(128, min(int(cols), cap))
    cols = (cols // 128) * 128
    cols = min(cols, _round_up(n, 128))      # no point tiling past the padded batch
    return max(128, cols)


def _kl_kernel(q_ref, p_ref, out_ref, acc_ref, *,
               valid_cols, tile_n, tiles_per_slice):
    """One (C, tile_n) tile (classes on sublanes, batch on lanes): stable
    softmax / log-softmax along the class (sublane) axis, accumulate per-column
    KL contributions into a (1, tile_n) accumulator; collapse to a scalar only
    in the per-slice epilogue."""
    s = pl.program_id(0)          # slice index ("parallel")
    t = pl.program_id(1)          # tile-within-slice ("arbitrary", carries acc)

    @pl.when(t == 0)
    def _():
        acc_ref[...] = jnp.zeros_like(acc_ref)

    # Stream original dtype from HBM; upcast on the VMEM tile only.
    q = q_ref[...].astype(jnp.float32)   # (C, tile_n) old-model logits (q)
    p = p_ref[...].astype(jnp.float32)   # (C, tile_n) new-model logits (p)

    # Stable softmax pieces of the old-model logits (class = sublane axis).
    q_max = jnp.max(q, axis=0, keepdims=True)                 # (1, tile_n)
    q_shift = q - q_max
    q_exp = jnp.exp(q_shift)
    q_sum = jnp.sum(q_exp, axis=0, keepdims=True)             # Z_q

    # log-softmax normalizer of the new-model logits.
    p_max = jnp.max(p, axis=0, keepdims=True)
    p_shift = p - p_max
    p_sum = jnp.sum(jnp.exp(p_shift), axis=0, keepdims=True)  # Z_p

    # Fused normalizers: one exact reciprocal + one log per column group.
    inv_zq = pl.reciprocal(q_sum, approx=False)
    log_ratio = jnp.log(p_sum * inv_zq)                       # log Z_p - log Z_q

    # log_q - log_p = (q_shift - p_shift) + (log Z_p - log Z_q)
    diff = (q_shift - p_shift) + log_ratio
    # sum_c q*(log_q - log_p) = (1/Z_q) * sum_c q_exp * diff  (1 mul per column)
    col_sum = jnp.sum(q_exp * diff, axis=0, keepdims=True) * inv_zq   # (1, tile_n)

    # Only tiles containing padded columns pay for the mask (iota+cmp+select).
    base = (s * tiles_per_slice + t) * tile_n
    has_pad = base + tile_n > valid_cols

    @pl.when(jnp.logical_not(has_pad))
    def _():
        acc_ref[...] += col_sum

    @pl.when(has_pad)
    def _():
        col_ids = base + jax.lax.broadcasted_iota(jnp.int32, (1, tile_n), 1)
        acc_ref[...] += jnp.where(col_ids < valid_cols, col_sum, 0.0)

    @pl.when(t == pl.num_programs(1) - 1)
    def _():
        partial = jnp.sum(acc_ref[...])                       # slice partial sum
        out_ref[...] = jnp.broadcast_to(partial, out_ref.shape)


def kl_divergence_loss(predictions, predictions_old_model, *,
                       tile_n=None, num_slices=None):
    """Pallas implementation of KL_divergence_loss.forward.

    predictions, predictions_old_model: (N, C) logits (f32 or bf16).
    Returns a scalar float32.
    """
    n, c = predictions.shape
    assert predictions_old_model.shape == (n, c)

    isz_q = jnp.dtype(predictions_old_model.dtype).itemsize
    isz_p = jnp.dtype(predictions.dtype).itemsize
    vmem_cap = _vmem_capacity_bytes()

    if tile_n is None:
        tile_n = _pick_tile_n(n, c, max(isz_q, isz_p), vmem_cap)
    tile_n = max(128, (int(tile_n) // 128) * 128)        # lane-aligned

    num_tiles = pl.cdiv(n, tile_n)

    # Split the row loop into independent partial sums across a leading
    # "parallel" axis (both TensorCores on v7x / megacore chips).  Odd tile
    # counts are handled with cdiv + the validity mask (never fall back to 1).
    if num_slices is None:
        num_slices = _default_num_slices()
    num_slices = max(1, min(int(num_slices), num_tiles))
    tiles_per_slice = -(-num_tiles // num_slices)
    n_total = num_slices * tiles_per_slice * tile_n

    # Lane-dense layout: classes -> sublanes, batch -> lanes.  Zero-pad the
    # batch axis so every block is fully in-bounds; padded columns are finite
    # (all-zero logits) and masked out in-kernel.
    q_t = jnp.pad(predictions_old_model.T, ((0, 0), (0, n_total - n)))
    p_t = jnp.pad(predictions.T, ((0, 0), (0, n_total - n)))

    kernel = functools.partial(_kl_kernel, valid_cols=n, tile_n=tile_n,
                               tiles_per_slice=tiles_per_slice)

    def in_map(s, t):
        return (0, s * tiles_per_slice + t)

    # Scoped-VMEM limit from lane/sublane-PADDED footprints: double-buffered
    # input blocks + f32 upcast temporaries + padded accumulator + slack,
    # clamped to ~90% of physical VMEM (64 MiB on v7x).
    c_pad = _round_up(c, 8)
    block_bytes_in = c_pad * tile_n * (isz_q + isz_p)    # one pipeline stage, both inputs
    temp_bytes = c_pad * tile_n * 4 * 8                  # f32 upcasts / exp / diff / products
    acc_bytes = 8 * tile_n * 4
    need = 2 * block_bytes_in + temp_bytes + acc_bytes + (8 << 20)
    vmem_limit = int(min(int(vmem_cap * 0.9), max(32 << 20, need)))

    partials = pl.pallas_call(
        kernel,
        out_shape=jax.ShapeDtypeStruct((num_slices, 8, 128), jnp.float32),
        grid_spec=pltpu.PrefetchScalarGridSpec(
            num_scalar_prefetch=0,
            grid=(num_slices, tiles_per_slice),
            in_specs=[
                pl.BlockSpec((c, tile_n), in_map),       # old-model logits (q), (C,N)
                pl.BlockSpec((c, tile_n), in_map),       # new-model logits (p), (C,N)
            ],
            out_specs=pl.BlockSpec((1, 8, 128), lambda s, t: (s, 0, 0)),
            scratch_shapes=[pltpu.VMEM((1, tile_n), jnp.float32)],
        ),
        compiler_params=pltpu.CompilerParams(
            dimension_semantics=("parallel", "arbitrary"),
            vmem_limit_bytes=vmem_limit,
        ),
    )(q_t, p_t)

    # Final mean over the batch happens in the wrapper (tiny XLA op).
    return jnp.sum(partials[:, 0, 0]) / jnp.float32(n)


def _reference(predictions, predictions_old_model):
    """Pure-JAX reference matching the PyTorch module."""
    q = jax.nn.softmax(predictions_old_model, axis=1)
    log_q = jax.nn.log_softmax(predictions_old_model, axis=1)
    log_p = jax.nn.log_softmax(predictions, axis=1)
    q_log_q = jnp.mean(jnp.sum(q * log_q, axis=1))
    q_log_p = jnp.mean(jnp.sum(q * log_p, axis=1))
    return q_log_q - q_log_p


if __name__ == "__main__":
    key = jax.random.PRNGKey(0)
    k1, k2, k3, k4, k5, k6 = jax.random.split(key, 6)

    # Case 1: small batch of class logits (11 gesture classes), f32, auto tile.
    N, C = 16, 11
    predictions = jax.random.normal(k1, (N, C), dtype=jnp.float32)            # new model
    predictions_old_model = jax.random.normal(k2, (N, C), dtype=jnp.float32)  # old model
    loss = jax.block_until_ready(kl_divergence_loss(predictions, predictions_old_model))
    ref = _reference(predictions, predictions_old_model)
    assert jnp.allclose(loss, ref, atol=1e-5, rtol=1e-5), (loss, ref)

    # Case 2: N not a multiple of the lane tile -> exercises the padded
    # columns + in-kernel validity mask on a single tile.
    N2 = 29
    p2 = jax.random.normal(k3, (N2, C), dtype=jnp.float32)
    q2 = jax.random.normal(k4, (N2, C), dtype=jnp.float32)
    loss2 = jax.block_until_ready(kl_divergence_loss(p2, q2, tile_n=128))
    ref2 = _reference(p2, q2)
    assert jnp.allclose(loss2, ref2, atol=1e-5, rtol=1e-5), (loss2, ref2)

    # Case 3: odd tile count with a forced 2-slice parallel split -> exercises
    # cdiv tiles_per_slice, the fully-padded overhang tile and multi-tile
    # accumulation (grid = (2, 2), 3 real tiles + 1 masked tile).
    N3 = 300
    p3 = jax.random.normal(k5, (N3, C), dtype=jnp.float32)
    q3 = jax.random.normal(k6, (N3, C), dtype=jnp.float32)
    loss3 = jax.block_until_ready(kl_divergence_loss(p3, q3, tile_n=128, num_slices=2))
    ref3 = _reference(p3, q3)
    assert jnp.allclose(loss3, ref3, atol=1e-5, rtol=1e-5), (loss3, ref3)

    # Case 4: bf16 logits stream at half the HBM bytes; math is still f32 in-kernel.
    p4 = predictions.astype(jnp.bfloat16)
    q4 = predictions_old_model.astype(jnp.bfloat16)
    loss4 = jax.block_until_ready(kl_divergence_loss(p4, q4))
    ref4 = _reference(p4.astype(jnp.float32), q4.astype(jnp.float32))
    assert jnp.allclose(loss4, ref4, atol=1e-5, rtol=1e-5), (loss4, ref4)

    print("KERNEL_OK")
</pallas_src>

<mosaic_0001>
module attributes {stable_mosaic.version = 11 : i64} {
  func.func @_kl_kernel(%arg0: i32, %arg1: i32, %arg2: memref<11x128xf32, #tpu.memory_space<vmem>>, %arg3: memref<11x128xf32, #tpu.memory_space<vmem>>, %arg4: memref<1x8x128xf32, #tpu.memory_space<vmem>>, %arg5: memref<1x128xf32, #tpu.memory_space<vmem>>) attributes {dimension_semantics = [#tpu.dimension_semantics<parallel>, #tpu.dimension_semantics<arbitrary>], iteration_bounds = array<i64: 1, 1>, scalar_prefetch = 0 : i64, scratch_operands = 1 : i64, tpu.core_type = #tpu.core_type<tc>, window_params = [{transform_indices = @transform_0, window_bounds = array<i64: 11, 128>}, {transform_indices = @transform_1, window_bounds = array<i64: 11, 128>}, {transform_indices = @transform_2, window_bounds = array<i64: 1, 8, 128>}]} {
    %c0_i32 = arith.constant 0 : i32
    %0 = arith.cmpi eq, %arg1, %c0_i32 : i32
    %1 = arith.extui %0 : i1 to i32
    %c0_i32_0 = arith.constant 0 : i32
    %2 = arith.cmpi ne, %1, %c0_i32_0 : i32
    scf.if %2 {
      %cst_13 = arith.constant 0.000000e+00 : f32
      %42 = vector.broadcast %cst_13 : f32 to vector<1x128xf32>
      %c0_14 = arith.constant 0 : index
      %c0_15 = arith.constant 0 : index
      %43 = vector.load %arg5[%c0_14, %c0_15] : memref<1x128xf32, #tpu.memory_space<vmem>>, vector<1x128xf32>
      tpu.vector_store %arg5[%c0_14, %c0_15], %42 {strides = array<i32>} : memref<1x128xf32, #tpu.memory_space<vmem>>, vector<1x128xf32>,
    } else {
    }
    %c0 = arith.constant 0 : index
    %c0_1 = arith.constant 0 : index
    %3 = vector.load %arg2[%c0, %c0_1] : memref<11x128xf32, #tpu.memory_space<vmem>>, vector<11x128xf32>
    %c0_2 = arith.constant 0 : index
    %c0_3 = arith.constant 0 : index
    %4 = vector.load %arg3[%c0_2, %c0_3] : memref<11x128xf32, #tpu.memory_space<vmem>>, vector<11x128xf32>
    %cst = arith.constant dense<0xFF800000> : vector<128xf32>
    %5 = vector.multi_reduction <maximumf>, %3, %cst [0] : vector<11x128xf32> to vector<128xf32>
    %6 = vector.shape_cast %5 : vector<128xf32> to vector<1x128xf32>
    %7 = vector.broadcast %6 : vector<1x128xf32> to vector<11x128xf32>
    %8 = arith.subf %3, %7 : vector<11x128xf32>
    %9 = math.exp %8 : vector<11x128xf32>
    %cst_4 = arith.constant dense<0.000000e+00> : vector<128xf32>
    %10 = vector.multi_reduction <add>, %9, %cst_4 [0] : vector<11x128xf32> to vector<128xf32>
    %11 = vector.shape_cast %10 : vector<128xf32> to vector<1x128xf32>
    %cst_5 = arith.constant dense<0xFF800000> : vector<128xf32>
    %12 = vector.multi_reduction <maximumf>, %4, %cst_5 [0] : vector<11x128xf32> to vector<128xf32>
    %13 = vector.shape_cast %12 : vector<128xf32> to vector<1x128xf32>
    %14 = vector.broadcast %13 : vector<1x128xf32> to vector<11x128xf32>
    %15 = arith.subf %4, %14 : vector<11x128xf32>
    %16 = math.exp %15 : vector<11x128xf32>
    %cst_6 = arith.constant dense<0.000000e+00> : vector<128xf32>
    %17 = vector.multi_reduction <add>, %16, %cst_6 [0] : vector<11x128xf32> to vector<128xf32>
    %18 = vector.shape_cast %17 : vector<128xf32> to vector<1x128xf32>
    %19 = tpu.reciprocal %11 : vector<1x128xf32> -> vector<1x128xf32>
    %20 = arith.mulf %18, %19 : vector<1x128xf32>
    %21 = math.log %20 : vector<1x128xf32>
    %22 = arith.subf %8, %15 : vector<11x128xf32>
    %23 = vector.broadcast %21 : vector<1x128xf32> to vector<11x128xf32>
    %24 = arith.addf %22, %23 : vector<11x128xf32>
    %25 = arith.mulf %9, %24 : vector<11x128xf32>
    %cst_7 = arith.constant dense<0.000000e+00> : vector<128xf32>
    %26 = vector.multi_reduction <add>, %25, %cst_7 [0] : vector<11x128xf32> to vector<128xf32>
    %27 = vector.shape_cast %26 : vector<128xf32> to vector<1x128xf32>
    %28 = arith.mulf %27, %19 : vector<1x128xf32>
    %c1_i32 = arith.constant 1 : i32
    %29 = arith.muli %arg0, %c1_i32 : i32
    %30 = arith.addi %29, %arg1 : i32
    %c128_i32 = arith.constant 128 : i32
    %31 = arith.muli %30, %c128_i32 : i32
    %c128_i32_8 = arith.constant 128 : i32
    %32 = arith.addi %31, %c128_i32_8 : i32
    %c16_i32 = arith.constant 16 : i32
    %33 = arith.cmpi sgt, %32, %c16_i32 : i32
    %true = arith.constant true
    %34 = arith.xori %33, %true : i1
    %35 = arith.extui %34 : i1 to i32
    %c0_i32_9 = arith.constant 0 : i32
    %36 = arith.cmpi ne, %35, %c0_i32_9 : i32
    scf.if %36 {
      %c0_13 = arith.constant 0 : index
      %c0_14 = arith.constant 0 : index
      %42 = vector.load %arg5[%c0_13, %c0_14] : memref<1x128xf32, #tpu.memory_space<vmem>>, vector<1x128xf32>
      %43 = arith.addf %42, %28 : vector<1x128xf32>
      %c0_15 = arith.constant 0 : index
      %c0_16 = arith.constant 0 : index
      %44 = vector.load %arg5[%c0_15, %c0_16] : memref<1x128xf32, #tpu.memory_space<vmem>>, vector<1x128xf32>
      tpu.vector_store %arg5[%c0_15, %c0_16], %43 {strides = array<i32>} : memref<1x128xf32, #tpu.memory_space<vmem>>, vector<1x128xf32>,
    } else {
    }
    %37 = arith.extui %33 : i1 to i32
    %c0_i32_10 = arith.constant 0 : i32
    %38 = arith.cmpi ne, %37, %c0_i32_10 : i32
    scf.if %38 {
      %42 = tpu.iota {dimensions = array<i32: 1>} : vector<1x128xi32>
      %43 = vector.broadcast %31 : i32 to vector<1x128xi32>
      %44 = arith.addi %43, %42 : vector<1x128xi32>
      %c0_13 = arith.constant 0 : index
      %c0_14 = arith.constant 0 : index
      %45 = vector.load %arg5[%c0_13, %c0_14] : memref<1x128xf32, #tpu.memory_space<vmem>>, vector<1x128xf32>
      %c16_i32_15 = arith.constant 16 : i32
      %46 = vector.broadcast %c16_i32_15 : i32 to vector<1x128xi32>
      %47 = arith.cmpi slt, %44, %46 : vector<1x128xi32>
      %cst_16 = arith.constant 0.000000e+00 : f32
      %48 = vector.broadcast %cst_16 : f32 to vector<1x128xf32>
      %49 = arith.select %47, %28, %48 : vector<1x128xi1>, vector<1x128xf32>
      %50 = arith.addf %45, %49 : vector<1x128xf32>
      %c0_17 = arith.constant 0 : index
      %c0_18 = arith.constant 0 : index
      %51 = vector.load %arg5[%c0_17, %c0_18] : memref<1x128xf32, #tpu.memory_space<vmem>>, vector<1x128xf32>
      tpu.vector_store %arg5[%c0_17, %c0_18], %50 {strides = array<i32>} : memref<1x128xf32, #tpu.memory_space<vmem>>, vector<1x128xf32>,
    } else {
    }
    %c0_i32_11 = arith.constant 0 : i32
    %39 = arith.cmpi eq, %arg1, %c0_i32_11 : i32
    %40 = arith.extui %39 : i1 to i32
    %c0_i32_12 = arith.constant 0 : i32
    %41 = arith.cmpi ne, %40, %c0_i32_12 : i32
    scf.if %41 {
      %c0_13 = arith.constant 0 : index
      %c0_14 = arith.constant 0 : index
      %42 = vector.load %arg5[%c0_13, %c0_14] : memref<1x128xf32, #tpu.memory_space<vmem>>, vector<1x128xf32>
      %43 = vector.shape_cast %42 : vector<1x128xf32> to vector<1x1x128xf32>
      %cst_15 = arith.constant dense<0.000000e+00> : vector<1xf32>
      %44 = vector.multi_reduction <add>, %43, %cst_15 [1, 2] : vector<1x1x128xf32> to vector<1xf32>
      %45 = vector.shape_cast %44 : vector<1xf32> to vector<1x1x1xf32>
      %46 = vector.extract %45[0, 0, 0] : f32 from vector<1x1x1xf32>
      %47 = vector.broadcast %46 : f32 to vector<1x8x128xf32>
      %c0_16 = arith.constant 0 : index
      %c0_17 = arith.constant 0 : index
      %c0_18 = arith.constant 0 : index
      %48 = vector.load %arg4[%c0_16, %c0_17, %c0_18] : memref<1x8x128xf32, #tpu.memory_space<vmem>>, vector<1x8x128xf32>
      tpu.vector_store %arg4[%c0_16, %c0_17, %c0_18], %47 {strides = array<i32>} : memref<1x8x128xf32, #tpu.memory_space<vmem>>, vector<1x8x128xf32>,
    } else {
    }
    return
  }
  func.func @transform_0(%arg0: i32, %arg1: i32) -> (i32, i32) {
    %c1_i32 = arith.constant 1 : i32
    %0 = arith.muli %arg0, %c1_i32 : i32
    %1 = arith.addi %0, %arg1 : i32
    %c0_i32 = arith.constant 0 : i32
    %c0_i32_0 = arith.constant 0 : i32
    return %c0_i32, %1 : i32, i32
  }
  func.func @transform_1(%arg0: i32, %arg1: i32) -> (i32, i32) {
    %c1_i32 = arith.constant 1 : i32
    %0 = arith.muli %arg0, %c1_i32 : i32
    %1 = arith.addi %0, %arg1 : i32
    %c0_i32 = arith.constant 0 : i32
    %c0_i32_0 = arith.constant 0 : i32
    return %c0_i32, %1 : i32, i32
  }
  func.func @transform_2(%arg0: i32, %arg1: i32) -> (i32, i32, i32) {
    %c0_i32 = arith.constant 0 : i32
    %c0_i32_0 = arith.constant 0 : i32
    %c0_i32_1 = arith.constant 0 : i32
    return %arg0, %c0_i32, %c0_i32_0 : i32, i32, i32
  }
}

</mosaic_0001>

<llo_original>
// kernel: tpu_custom_call.1
$region0: #{tpu_custom_call.1}
  #allocation0 [shape = 'u32[]', space=smem, size = 0x4, offset = 0x4, fixed_abs, tag = 'smem constant byte address 0x4 - core index']
  #allocation1 [shape = 'u32[72,128]{1,0:T(1,128)}', space=vmem, size = 0x9000, scoped, tag = 'internal scratch']
  #allocation2 [shape = 'f32[1,128]{1,0:T(1,128)}', space=vmem, size = 0x200, scoped, tag = 'scratch operand']
  %s0 = inlined_call_operand.hbm [shape: f32[11,128], index: 0, kind: input, shape index: {}]
  %s1 = inlined_call_operand.hbm [shape: f32[11,128], index: 1, kind: input, shape index: {}]
  %s2 = inlined_call_operand.hbm [shape: f32[1,8,128], index: 2, kind: output, shape index: {}]
  %s3 = sld [smem:[#allocation0]]
  $region42: #{tpu_custom_call.1} parent=0
    _
  %s5 = ssub.s32 1, %s3
  %s6 = scalar_select 0, %s5, %s3
  $region1: #{tpu_custom_call.1} parent=0
    #allocation3 [shape = 'u8[8192]{0}', space=vmem, size = 0x2000, scoped, tag = 'input window, operand 0, single buffered']
    #allocation4 [shape = 's32[1]{0}', space=sflag, size = 0x4, scoped, tag = 'scoped memory for tpu_custom_call.1']
    #allocation5 [shape = 's32[1]{0}', space=sflag, size = 0x4, scoped, tag = 'scoped memory for tpu_custom_call.1']
    #allocation6 [shape = 'u8[8192]{0}', space=vmem, size = 0x2000, scoped, tag = 'input window, operand 1, single buffered']
    #allocation7 [shape = 's32[1]{0}', space=sflag, size = 0x4, scoped, tag = 'scoped memory for tpu_custom_call.1']
    #allocation8 [shape = 'u8[4096]{0}', space=vmem, size = 0x1000, scoped, tag = 'output window, operand 0, single buffered']
    %7 = vsyncpa [#allocation4], 0
    %8 = vsyncpa [#allocation7], 0
    %9 = vsyncpa [#allocation5], 0
    // Predicated region
    $region2: #{tpu_custom_call.1} parent=1 // pred_check
      _
    $region3: #{tpu_custom_call.1} parent=1 // pred_check_branch
      %11 = sbr.rel (0) target = $region5
    $region4: #{tpu_custom_call.1} parent=1 // pred_region
      %s12 = sadd.s32 0, 0
      %14 = vsyncadd [#allocation4], 0
      %s15 = smul.addr %s12, 8
      %s16 = scalar_lea.hbm %s0, %s15
      %s17 = sshll.u32 %s16, 4
      %s18 = int_to_ptr.hbm [resolvable:$true] %s17
      %s19 = sshll.u32 [#allocation3], 4
      %s20 = int_to_ptr.vmem [resolvable:$true] %s19
      %25 = dma.hbm_to_vmem [thread:$0]  %s18, 256, %s20, [#allocation4], 128, 128, 8
    $region5: #{tpu_custom_call.1} parent=1 // pred_fallthru
      _
    // Predicated region
    $region6: #{tpu_custom_call.1} parent=1 // pred_check
      _
    $region7: #{tpu_custom_call.1} parent=1 // pred_check_branch
      %27 = sbr.rel (0) target = $region9
    $region8: #{tpu_custom_call.1} parent=1 // pred_region
      %s28 = sadd.s32 0, 0
      %30 = vsyncadd [#allocation7], 0
      %s31 = smul.addr %s28, 8
      %s32 = scalar_lea.hbm %s1, %s31
      %s33 = sshll.u32 %s32, 4
      %s34 = int_to_ptr.hbm [resolvable:$true] %s33
      %s35 = sshll.u32 [#allocation6], 4
      %s36 = int_to_ptr.vmem [resolvable:$true] %s35
      %41 = dma.hbm_to_vmem [thread:$0]  %s34, 256, %s36, [#allocation7], 128, 128, 8
    $region9: #{tpu_custom_call.1} parent=1 // pred_fallthru
      _
    // Predicated region
    $region10: #{tpu_custom_call.1} parent=1 // pred_check
      _
    $region11: #{tpu_custom_call.1} parent=1 // pred_check_branch
      %43 = sbr.rel (0) target = $region13
    $region12: #{tpu_custom_call.1} parent=1 // pred_region
      %45 = dma.done [#allocation4], 256
    $region13: #{tpu_custom_call.1} parent=1 // pred_fallthru
      _
    // Predicated region
    $region14: #{tpu_custom_call.1} parent=1 // pred_check
      _
    $region15: #{tpu_custom_call.1} parent=1 // pred_check_branch
      %47 = sbr.rel (0) target = $region17
    $region16: #{tpu_custom_call.1} parent=1 // pred_region
      %49 = dma.done [#allocation7], 256
    $region17: #{tpu_custom_call.1} parent=1 // pred_fallthru
      _
    %s50 = sadd.s32 0, 0
    %s51 = sadd.s32 0, 0
    %p52 = scmp.eq.s32.totalorder 0, 0
    // Predicated region
    $region18: #{tpu_custom_call.1} parent=1 // pred_check
      %p53 = pneg %p52
    $region19: #{tpu_custom_call.1} parent=1 // pred_check_branch
      %55 = sbr.rel (%p53) target = $region21
    $region20: #{tpu_custom_call.1} parent=1 // pred_region
      %56 = vst [vmem:[#allocation2] sm:$0x1] 0.0
    $region21: #{tpu_custom_call.1} parent=1 // pred_fallthru
      _
    %v57 = vld [vmem:[#allocation3] sm:$0xff]
    %v58 = vld [vmem:[#allocation3 + $0x8] sm:$0x7]
    %v59 = vld [vmem:[#allocation6] sm:$0xff]
    %v60 = vld [vmem:[#allocation6 + $0x8] sm:$0x7]
    %vm61 = vcmask 1042432
    %v62 = vsel %vm61, %v58, -inf
    %v63 = vmax.f32 %v57, %v62
    %v64 = vrot.slane %v63, 4
    %v65 = vmax.f32 %v63, %v64
    %v66 = vrot.slane %v65, 2
    %v67 = vmax.f32 %v65, %v66
    %v68 = vrot.slane %v67, 1
    %v69 = vmax.f32 %v67, %v68
    %v70 = vsub.f32 %v57, %v69
    %v71 = vsub.f32 %v58, %v69
    %v72 = vmul.f32 %v70, 1.442695
    %v73 = vpow.pop %v72
    %v74 = vmul.f32 %v71, 1.442695
    %v75 = vpow.pop %v74
    %v76 = vsel %vm61, %v75, 0.0
    %v77 = vadd.f32 %v73, %v76
    %v78 = vrot.slane %v77, 4
    %v79 = vadd.f32 %v77, %v78
    %v80 = vrot.slane %v79, 2
    %v81 = vadd.f32 %v79, %v80
    %v82 = vrot.slane %v81, 1
    %v83 = vadd.f32 %v81, %v82
    %v84 = vsel %vm61, %v60, -inf
    %v85 = vmax.f32 %v59, %v84
    %v86 = vrot.slane %v85, 4
    %v87 = vmax.f32 %v85, %v86
    %v88 = vrot.slane %v87, 2
    %v89 = vmax.f32 %v87, %v88
    %v90 = vrot.slane %v89, 1
    %v91 = vmax.f32 %v89, %v90
    %v92 = vsub.f32 %v59, %v91
    %v93 = vsub.f32 %v60, %v91
    %v94 = vmul.f32 %v92, 1.442695
    %v95 = vpow.pop %v94
    %v96 = vmul.f32 %v93, 1.442695
    %v97 = vpow.pop %v96
    %v98 = vsel %vm61, %v97, 0.0
    %v99 = vadd.f32 %v95, %v98
    %v100 = vrot.slane %v99, 4
    %v101 = vadd.f32 %v99, %v100
    %v102 = vrot.slane %v101, 2
    %v103 = vadd.f32 %v101, %v102
    %v104 = vrot.slane %v103, 1
    %v105 = vadd.f32 %v103, %v104
    %v106 = vrcp.pop %v83
    %v107 = vmul.f32 %v83, %v106
    %v108 = vsub.f32 1.0, %v107
    %v109 = vmul.f32 %v106, %v108
    %v110 = vadd.f32 %v106, %v109
    %vm111 = vweird.f32 %v83
    %vm112 = vweird.f32 %v106
    %vm113 = vmor %vm111, %vm112
    %v114 = vsel %vm113, %v106, %v110
    %v115 = vand.u32 2147483647, %v83
    %vm116 = vcmp.eq.f32.partialorder %v115, 8.507059e+37
    %v117 = vand.u32 %v83, 2147483648
    %v118 = vor.u32 1.1754944e-38, %v117
    %v119 = vsel %vm116, %v118, %v114
    %v120 = vmul.f32 %v105, %v119
    %v121 = vlog2.pop %v120
    %v122 = vmul.f32 %v121, 0.6931472
    %v123 = vsub.f32 %v70, %v92
    %v124 = vsub.f32 %v71, %v93
    %v125 = vadd.f32 %v123, %v122
    %v126 = vadd.f32 %v124, %v122
    %v127 = vmul.f32 %v73, %v125
    %v128 = vmul.f32 %v75, %v126
    %v129 = vsel %vm61, %v128, 0.0
    %v130 = vadd.f32 %v127, %v129
    %v131 = vrot.slane %v130, 4
    %v132 = vadd.f32 %v130, %v131
    %v133 = vrot.slane %v132, 2
    %v134 = vadd.f32 %v132, %v133
    %v135 = vrot.slane %v134, 1
    %v136 = vadd.f32 %v134, %v135
    %v137 = vmul.f32 %v136, %v119
    %s138 = sadd.s32 0, 0
    %s139 = smul.u32 %s138, 128
    %s140 = sadd.s32 %s139, 128
    %p141 = scmp.gt.s32.totalorder %s140, 16
    %p142 = scmp.le.s32.totalorder %s140, 16
    // Predicated region
    $region22: #{tpu_custom_call.1} parent=1 // pred_check
      %p143 = pneg %p142
    $region23: #{tpu_custom_call.1} parent=1 // pred_check_branch
      %145 = sbr.rel (%p143) target = $region25
    $region24: #{tpu_custom_call.1} parent=1 // pred_region
      %v146 = vld [vmem:[#allocation2] sm:$0x1]
      %v147 = vadd.f32 %v146, %v137
      %148 = vst [vmem:[#allocation2] sm:$0x1] %v147
    $region25: #{tpu_custom_call.1} parent=1 // pred_fallthru
      _
    // Predicated region
    $region26: #{tpu_custom_call.1} parent=1 // pred_check
      %p149 = pneg %p141
    $region27: #{tpu_custom_call.1} parent=1 // pred_check_branch
      %151 = sbr.rel (%p149) target = $region29
    $region28: #{tpu_custom_call.1} parent=1 // pred_region
      %v152 = vlaneseq
      %v153 = vand.u32 %v152, 127
      %v154 = vstv %s139
      %v155 = vadd.s32 %v154, %v153
      %v156 = vld [vmem:[#allocation2] sm:$0x1]
      %vm157 = vcmp.lt.s32.totalorder %v155, 16
      %v158 = vsel %vm157, %v137, 0.0
      %v159 = vadd.f32 %v156, %v158
      %160 = vst [vmem:[#allocation2] sm:$0x1] %v159
    $region29: #{tpu_custom_call.1} parent=1 // pred_fallthru
      _
    // Predicated region
    $region30: #{tpu_custom_call.1} parent=1 // pred_check
      %p161 = pneg %p52
    $region31: #{tpu_custom_call.1} parent=1 // pred_check_branch
      %163 = sbr.rel (%p161) target = $region33
    $region32: #{tpu_custom_call.1} parent=1 // pred_region
      %v164 = vld [vmem:[#allocation2] sm:$0x1]
      %vm165 = vcmask 1040384
      %v166 = vsel %vm165, %v164, 0.0
      %167 = vadd.xlane.f32.xlu0 %v166
      %v168 = vpop.xlane.xlu0 %167
      %v169 = vrot.slane %v168, 4
      %v170 = vadd.f32 %v168, %v169
      %v171 = vrot.slane %v170, 2
      %v172 = vadd.f32 %v170, %v171
      %v173 = vrot.slane %v172, 1
      %v174 = vadd.f32 %v172, %v173
      %s175 = vtos %v174
      %v176 = vstv %s175
      %177 = vst [vmem:[#allocation8] sm:$0xff] %v176
    $region33: #{tpu_custom_call.1} parent=1 // pred_fallthru
      _
    // Predicated region
    $region34: #{tpu_custom_call.1} parent=1 // pred_check
      _
    $region35: #{tpu_custom_call.1} parent=1 // pred_check_branch
      %179 = sbr.rel (0) target = $region37
    $region36: #{tpu_custom_call.1} parent=1 // pred_region
      %181 = vsyncadd [#allocation5], 0
      %s183 = sshll.u32 [#allocation8], 4
      %s184 = int_to_ptr.vmem [resolvable:$true] %s183
      %s185 = sshll.u32 %s2, 4
      %s186 = int_to_ptr.hbm [resolvable:$true] %s185
      %188 = dma.vmem_to_hbm [thread:$0]  %s184, 128, %s186, [#allocation5]
    $region37: #{tpu_custom_call.1} parent=1 // pred_fallthru
      _
    // Predicated region
    $region38: #{tpu_custom_call.1} parent=1 // pred_check
      _
    $region39: #{tpu_custom_call.1} parent=1 // pred_check_branch
      %190 = sbr.rel (0) target = $region41
    $region40: #{tpu_custom_call.1} parent=1 // pred_region
      %192 = dma.done [#allocation5], 128
    $region41: #{tpu_custom_call.1} parent=1 // pred_fallthru
      _
    %193 = vsyncpa [#allocation4], 1
    %194 = vsyncpa [#allocation7], 1
    %195 = vsyncpa [#allocation5], 1

</llo_original>
